<compile_context>
chip_gen: v5e
topology: v5e:2x2
jax: 0.10.0
libtpu: 0.0.40
codegen_flags: <defaults>
</compile_context>

<pallas_src>
import jax
import jax.numpy as jnp
from jax.experimental import pallas as pl
from jax.experimental.pallas import tpu as pltpu


OUT_PAD = 128  # lane-dense output width


def _mlp_kernel(x_ref, w0_ref, b0_ref, w1_ref, b1_ref, w2_ref, b2_ref, o_ref):
    """Fused 3-layer MLP: (Linear -> Sigmoid) x 3 on one batch tile."""
    x = x_ref[...]                       # (TB, in_dim)
    w0 = w0_ref[...]                     # (in_dim, H0)

    # Layer 0: K = in_dim is tiny (2) -> VPU broadcast FMAs, skip the MXU.
    tb, in_dim = x.shape
    h0 = jnp.broadcast_to(b0_ref[...], (tb, w0.shape[1]))
    for k in range(in_dim):              # static unroll over input features
        h0 = h0 + x[:, k:k + 1] * w0[k:k + 1, :]
    h0 = jax.nn.sigmoid(h0)

    # Layer 1: 32x16 matmul on the MXU, f32 accumulate.
    h1 = jnp.dot(h0, w1_ref[...], preferred_element_type=jnp.float32) + b1_ref[...]
    h1 = jax.nn.sigmoid(h1)

    # Layer 2 (output): weight pre-padded to 128 lanes -> unmasked, lane-dense
    # store of the whole (TB, 128) slab.  Padded lanes are discarded outside.
    h2 = jnp.dot(h1, w2_ref[...], preferred_element_type=jnp.float32) + b2_ref[...]
    o_ref[...] = jax.nn.sigmoid(h2)


def prepare_params(params, out_pad=OUT_PAD):
    """One-time prep: transpose PyTorch (out,in) weights to (in,out),
    reshape biases to (1,out), and pad the output layer to `out_pad` lanes."""
    (w0, b0), (w1, b1), (w2, b2) = params
    w0t = jnp.asarray(w0).T                      # (in, H0)
    w1t = jnp.asarray(w1).T                      # (H0, H1)
    w2t = jnp.asarray(w2).T                      # (H1, out)
    out_dim = w2t.shape[1]
    pad = out_pad - out_dim
    w2p = jnp.pad(w2t, ((0, 0), (0, pad)))       # (H1, out_pad)
    b2p = jnp.pad(jnp.asarray(b2)[None, :], ((0, 0), (0, pad)))  # (1, out_pad)
    return (w0t, jnp.asarray(b0)[None, :], w1t, jnp.asarray(b1)[None, :],
            w2p, b2p, out_dim)


def logic_gate_forward(x, prepped, tb=128):
    """x: (B, input_size) f32; prepped: output of prepare_params()."""
    w0t, b0r, w1t, b1r, w2p, b2p, out_dim = prepped
    B, in_dim = x.shape
    out_pad = w2p.shape[1]

    # Pad batch up to a multiple of the tile so every grid step is full.
    b_pad = pl.cdiv(B, tb) * tb
    if b_pad != B:
        x = jnp.pad(x, ((0, b_pad - B), (0, 0)))

    def resident(shape):
        # Whole-array block that never changes with the grid index ->
        # weights/biases stay VMEM-resident across all batch tiles.
        return pl.BlockSpec(shape, lambda i: (0, 0))

    out = pl.pallas_call(
        _mlp_kernel,
        out_shape=jax.ShapeDtypeStruct((b_pad, out_pad), jnp.float32),
        grid=(b_pad // tb,),
        in_specs=[
            pl.BlockSpec((tb, in_dim), lambda i: (i, 0)),   # batch-tiled input
            resident(w0t.shape), resident(b0r.shape),
            resident(w1t.shape), resident(b1r.shape),
            resident(w2p.shape), resident(b2p.shape),
        ],
        out_specs=pl.BlockSpec((tb, out_pad), lambda i: (i, 0)),
        compiler_params=pltpu.CompilerParams(
            dimension_semantics=("parallel",)),
    )(x, w0t, b0r, w1t, b1r, w2p, b2p)

    return out[:B, :out_dim]


# ----------------------------------------------------------------------------
# Parameter init matching the PyTorch module (xavier_uniform_ weights,
# default nn.Linear bias init).
# ----------------------------------------------------------------------------
def _xavier_uniform(key, out_features, in_features):
    bound = (6.0 / (in_features + out_features)) ** 0.5
    return jax.random.uniform(
        key, (out_features, in_features), jnp.float32, -bound, bound)


def _bias_init(key, out_features, in_features):
    bound = 1.0 / (in_features ** 0.5)
    return jax.random.uniform(key, (out_features,), jnp.float32, -bound, bound)


def init_params(key, input_size, hidden_sizes, output_size):
    layer_sizes = [input_size] + hidden_sizes + [output_size]
    params = []
    for i in range(len(layer_sizes) - 1):
        key, kw, kb = jax.random.split(key, 3)
        fan_in, fan_out = layer_sizes[i], layer_sizes[i + 1]
        w = _xavier_uniform(kw, fan_out, fan_in)   # (out, in), PyTorch layout
        b = _bias_init(kb, fan_out, fan_in)        # (out,)
        params.append((w, b))
    return params


if __name__ == "__main__":
    # XOR-style gate model: input_size=2, two hidden layers, scalar output.
    input_size, hidden_sizes, output_size = 2, [32, 16], 1
    batch = 8

    key = jax.random.PRNGKey(0)
    key, kx = jax.random.split(key)
    x = jax.random.uniform(kx, (batch, input_size), jnp.float32)

    params = init_params(key, input_size, hidden_sizes, output_size)
    prepped = prepare_params(params)          # one-time transpose/pad (hoisted)

    out = logic_gate_forward(x, prepped)
    jax.block_until_ready(out)

    # Pure-JAX reference (sigmoid after every layer, incl. output).
    ref = x
    for (w, b) in params:
        ref = jax.nn.sigmoid(ref @ w.T + b)

    assert out.shape == (batch, output_size)
    assert jnp.allclose(out, ref, atol=1e-5), "mismatch vs reference"

    print("KERNEL_OK")
</pallas_src>

<mosaic_0001>
module attributes {stable_mosaic.version = 11 : i64} {
  func.func @_mlp_kernel(%arg0: i32, %arg1: memref<128x2xf32, #tpu.memory_space<vmem>>, %arg2: memref<2x32xf32, #tpu.memory_space<vmem>>, %arg3: memref<1x32xf32, #tpu.memory_space<vmem>>, %arg4: memref<32x16xf32, #tpu.memory_space<vmem>>, %arg5: memref<1x16xf32, #tpu.memory_space<vmem>>, %arg6: memref<16x128xf32, #tpu.memory_space<vmem>>, %arg7: memref<1x128xf32, #tpu.memory_space<vmem>>, %arg8: memref<128x128xf32, #tpu.memory_space<vmem>>) attributes {dimension_semantics = [#tpu.dimension_semantics<parallel>], iteration_bounds = array<i64: 1>, scalar_prefetch = 0 : i64, scratch_operands = 0 : i64, tpu.core_type = #tpu.core_type<tc>, window_params = [{transform_indices = @transform_0, window_bounds = array<i64: 128, 2>}, {pipeline_mode = #tpu.pipeline_mode<synchronous>, transform_indices = @transform_1, window_bounds = array<i64: 2, 32>}, {pipeline_mode = #tpu.pipeline_mode<synchronous>, transform_indices = @transform_2, window_bounds = array<i64: 1, 32>}, {pipeline_mode = #tpu.pipeline_mode<synchronous>, transform_indices = @transform_3, window_bounds = array<i64: 32, 16>}, {pipeline_mode = #tpu.pipeline_mode<synchronous>, transform_indices = @transform_4, window_bounds = array<i64: 1, 16>}, {pipeline_mode = #tpu.pipeline_mode<synchronous>, transform_indices = @transform_5, window_bounds = array<i64: 16, 128>}, {pipeline_mode = #tpu.pipeline_mode<synchronous>, transform_indices = @transform_6, window_bounds = array<i64: 1, 128>}, {transform_indices = @transform_7, window_bounds = array<i64: 128, 128>}]} {
    %c0 = arith.constant 0 : index
    %c0_0 = arith.constant 0 : index
    %0 = vector.load %arg1[%c0, %c0_0] : memref<128x2xf32, #tpu.memory_space<vmem>>, vector<128x2xf32>
    %c0_1 = arith.constant 0 : index
    %c0_2 = arith.constant 0 : index
    %1 = vector.load %arg2[%c0_1, %c0_2] : memref<2x32xf32, #tpu.memory_space<vmem>>, vector<2x32xf32>
    %c0_3 = arith.constant 0 : index
    %c0_4 = arith.constant 0 : index
    %2 = vector.load %arg3[%c0_3, %c0_4] : memref<1x32xf32, #tpu.memory_space<vmem>>, vector<1x32xf32>
    %3 = vector.shape_cast %2 : vector<1x32xf32> to vector<1x32xf32>
    %4 = vector.broadcast %3 : vector<1x32xf32> to vector<128x32xf32>
    %5 = vector.extract_strided_slice %0 {offsets = [0, 0], sizes = [128, 1], strides = [1, 1]} : vector<128x2xf32> to vector<128x1xf32>
    %6 = vector.extract_strided_slice %1 {offsets = [0, 0], sizes = [1, 32], strides = [1, 1]} : vector<2x32xf32> to vector<1x32xf32>
    %7 = vector.broadcast %5 : vector<128x1xf32> to vector<128x32xf32>
    %8 = vector.broadcast %6 : vector<1x32xf32> to vector<128x32xf32>
    %9 = arith.mulf %7, %8 : vector<128x32xf32>
    %10 = arith.addf %4, %9 : vector<128x32xf32>
    %11 = vector.extract_strided_slice %0 {offsets = [0, 1], sizes = [128, 1], strides = [1, 1]} : vector<128x2xf32> to vector<128x1xf32>
    %12 = vector.extract_strided_slice %1 {offsets = [1, 0], sizes = [1, 32], strides = [1, 1]} : vector<2x32xf32> to vector<1x32xf32>
    %13 = vector.broadcast %11 : vector<128x1xf32> to vector<128x32xf32>
    %14 = vector.broadcast %12 : vector<1x32xf32> to vector<128x32xf32>
    %15 = arith.mulf %13, %14 : vector<128x32xf32>
    %16 = arith.addf %10, %15 : vector<128x32xf32>
    %17 = arith.negf %16 : vector<128x32xf32>
    %18 = math.exp %17 : vector<128x32xf32>
    %cst = arith.constant 1.000000e+00 : f32
    %19 = vector.broadcast %cst : f32 to vector<128x32xf32>
    %20 = arith.addf %19, %18 : vector<128x32xf32>
    %21 = arith.divf %19, %20 : vector<128x32xf32>
    %c0_5 = arith.constant 0 : index
    %c0_6 = arith.constant 0 : index
    %22 = vector.load %arg4[%c0_5, %c0_6] : memref<32x16xf32, #tpu.memory_space<vmem>>, vector<32x16xf32>
    %cst_7 = arith.constant dense<0.000000e+00> : vector<128x16xf32>
    %23 = tpu.matmul %21, %22, %cst_7 {dimension_numbers = #tpu.dot_dimension_numbers<[1], [0], [0], [1], [0, 0, 1, 1], [], []>} : vector<128x32xf32>, vector<32x16xf32>, vector<128x16xf32> -> vector<128x16xf32>
    %c0_8 = arith.constant 0 : index
    %c0_9 = arith.constant 0 : index
    %24 = vector.load %arg5[%c0_8, %c0_9] : memref<1x16xf32, #tpu.memory_space<vmem>>, vector<1x16xf32>
    %25 = vector.broadcast %24 : vector<1x16xf32> to vector<128x16xf32>
    %26 = arith.addf %23, %25 : vector<128x16xf32>
    %27 = arith.negf %26 : vector<128x16xf32>
    %28 = math.exp %27 : vector<128x16xf32>
    %cst_10 = arith.constant 1.000000e+00 : f32
    %29 = vector.broadcast %cst_10 : f32 to vector<128x16xf32>
    %30 = arith.addf %29, %28 : vector<128x16xf32>
    %31 = arith.divf %29, %30 : vector<128x16xf32>
    %c0_11 = arith.constant 0 : index
    %c0_12 = arith.constant 0 : index
    %32 = vector.load %arg6[%c0_11, %c0_12] : memref<16x128xf32, #tpu.memory_space<vmem>>, vector<16x128xf32>
    %cst_13 = arith.constant dense<0.000000e+00> : vector<128x128xf32>
    %33 = tpu.matmul %31, %32, %cst_13 {dimension_numbers = #tpu.dot_dimension_numbers<[1], [0], [0], [1], [0, 0, 1, 1], [], []>} : vector<128x16xf32>, vector<16x128xf32>, vector<128x128xf32> -> vector<128x128xf32>
    %c0_14 = arith.constant 0 : index
    %c0_15 = arith.constant 0 : index
    %34 = vector.load %arg7[%c0_14, %c0_15] : memref<1x128xf32, #tpu.memory_space<vmem>>, vector<1x128xf32>
    %35 = vector.broadcast %34 : vector<1x128xf32> to vector<128x128xf32>
    %36 = arith.addf %33, %35 : vector<128x128xf32>
    %37 = arith.negf %36 : vector<128x128xf32>
    %38 = math.exp %37 : vector<128x128xf32>
    %cst_16 = arith.constant 1.000000e+00 : f32
    %39 = vector.broadcast %cst_16 : f32 to vector<128x128xf32>
    %40 = arith.addf %39, %38 : vector<128x128xf32>
    %41 = arith.divf %39, %40 : vector<128x128xf32>
    %c0_17 = arith.constant 0 : index
    %c0_18 = arith.constant 0 : index
    %42 = vector.load %arg8[%c0_17, %c0_18] : memref<128x128xf32, #tpu.memory_space<vmem>>, vector<128x128xf32>
    tpu.vector_store %arg8[%c0_17, %c0_18], %41 {strides = array<i32>} : memref<128x128xf32, #tpu.memory_space<vmem>>, vector<128x128xf32>,
    return
  }
  func.func @transform_0(%arg0: i32) -> (i32, i32) {
    %c0_i32 = arith.constant 0 : i32
    %c0_i32_0 = arith.constant 0 : i32
    return %arg0, %c0_i32 : i32, i32
  }
  func.func @transform_1(%arg0: i32) -> (i32, i32) {
    %c0_i32 = arith.constant 0 : i32
    %c0_i32_0 = arith.constant 0 : i32
    %c0_i32_1 = arith.constant 0 : i32
    return %c0_i32, %c0_i32_0 : i32, i32
  }
  func.func @transform_2(%arg0: i32) -> (i32, i32) {
    %c0_i32 = arith.constant 0 : i32
    %c0_i32_0 = arith.constant 0 : i32
    %c0_i32_1 = arith.constant 0 : i32
    return %c0_i32, %c0_i32_0 : i32, i32
  }
  func.func @transform_3(%arg0: i32) -> (i32, i32) {
    %c0_i32 = arith.constant 0 : i32
    %c0_i32_0 = arith.constant 0 : i32
    %c0_i32_1 = arith.constant 0 : i32
    return %c0_i32, %c0_i32_0 : i32, i32
  }
  func.func @transform_4(%arg0: i32) -> (i32, i32) {
    %c0_i32 = arith.constant 0 : i32
    %c0_i32_0 = arith.constant 0 : i32
    %c0_i32_1 = arith.constant 0 : i32
    return %c0_i32, %c0_i32_0 : i32, i32
  }
  func.func @transform_5(%arg0: i32) -> (i32, i32) {
    %c0_i32 = arith.constant 0 : i32
    %c0_i32_0 = arith.constant 0 : i32
    %c0_i32_1 = arith.constant 0 : i32
    return %c0_i32, %c0_i32_0 : i32, i32
  }
  func.func @transform_6(%arg0: i32) -> (i32, i32) {
    %c0_i32 = arith.constant 0 : i32
    %c0_i32_0 = arith.constant 0 : i32
    %c0_i32_1 = arith.constant 0 : i32
    return %c0_i32, %c0_i32_0 : i32, i32
  }
  func.func @transform_7(%arg0: i32) -> (i32, i32) {
    %c0_i32 = arith.constant 0 : i32
    %c0_i32_0 = arith.constant 0 : i32
    return %arg0, %c0_i32 : i32, i32
  }
}

</mosaic_0001>

<llo_original>
// kernel: tpu_custom_call.1
$region0: #{tpu_custom_call.1}
  #allocation0 [shape = 'u32[]', space=smem, size = 0x4, offset = 0x4, fixed_abs, tag = 'smem constant byte address 0x4 - core index']
  #allocation1 [shape = 'u32[72,128]{1,0:T(1,128)}', space=vmem, size = 0x9000, scoped, tag = 'internal scratch']
  %s0 = inlined_call_operand.vmem [shape: f32[128,2], index: 0, kind: input, shape index: {}]
  %s1 = inlined_call_operand.vmem [shape: f32[2,32], index: 1, kind: input, shape index: {}]
  %s2 = inlined_call_operand.vmem [shape: f32[1,32], index: 2, kind: input, shape index: {}]
  %s3 = inlined_call_operand.vmem [shape: f32[32,16], index: 3, kind: input, shape index: {}]
  %s4 = inlined_call_operand.vmem [shape: f32[1,16], index: 4, kind: input, shape index: {}]
  %s5 = inlined_call_operand.vmem [shape: f32[16,128], index: 5, kind: input, shape index: {}]
  %s6 = inlined_call_operand.vmem [shape: f32[1,128], index: 6, kind: input, shape index: {}]
  %s7 = inlined_call_operand.hbm [shape: f32[128,128], index: 7, kind: output, shape index: {}]
  %s8 = sld [smem:[#allocation0]]
  $region38: #{tpu_custom_call.1} parent=0
    _
  %s10 = ssub.s32 1, %s8
  %s11 = scalar_select 0, %s10, %s8
  $region1: #{tpu_custom_call.1} parent=0
    #allocation2 [shape = 'u8[65536]{0}', space=vmem, size = 0x10000, scoped, tag = 'output window, operand 0, single buffered']
    #allocation3 [shape = 's32[1]{0}', space=sflag, size = 0x4, scoped, tag = 'scoped memory for tpu_custom_call.1']
    %12 = vsyncpa [#allocation3], 0
    // Predicated region
    $region2: #{tpu_custom_call.1} parent=1 // pred_check
      _
    $region3: #{tpu_custom_call.1} parent=1 // pred_check_branch
      %14 = sbr.rel (0) target = $region5
    $region4: #{tpu_custom_call.1} parent=1 // pred_region
      _
    $region5: #{tpu_custom_call.1} parent=1 // pred_fallthru
      _
    // Predicated region
    $region6: #{tpu_custom_call.1} parent=1 // pred_check
      _
    $region7: #{tpu_custom_call.1} parent=1 // pred_check_branch
      %16 = sbr.rel (0) target = $region9
    $region8: #{tpu_custom_call.1} parent=1 // pred_region
      _
    $region9: #{tpu_custom_call.1} parent=1 // pred_fallthru
      _
    // Predicated region
    $region10: #{tpu_custom_call.1} parent=1 // pred_check
      _
    $region11: #{tpu_custom_call.1} parent=1 // pred_check_branch
      %18 = sbr.rel (0) target = $region13
    $region12: #{tpu_custom_call.1} parent=1 // pred_region
      _
    $region13: #{tpu_custom_call.1} parent=1 // pred_fallthru
      _
    // Predicated region
    $region14: #{tpu_custom_call.1} parent=1 // pred_check
      _
    $region15: #{tpu_custom_call.1} parent=1 // pred_check_branch
      %20 = sbr.rel (0) target = $region17
    $region16: #{tpu_custom_call.1} parent=1 // pred_region
      _
    $region17: #{tpu_custom_call.1} parent=1 // pred_fallthru
      _
    // Predicated region
    $region18: #{tpu_custom_call.1} parent=1 // pred_check
      _
    $region19: #{tpu_custom_call.1} parent=1 // pred_check_branch
      %22 = sbr.rel (0) target = $region21
    $region20: #{tpu_custom_call.1} parent=1 // pred_region
      _
    $region21: #{tpu_custom_call.1} parent=1 // pred_fallthru
      _
    // Predicated region
    $region22: #{tpu_custom_call.1} parent=1 // pred_check
      _
    $region23: #{tpu_custom_call.1} parent=1 // pred_check_branch
      %24 = sbr.rel (0) target = $region25
    $region24: #{tpu_custom_call.1} parent=1 // pred_region
      _
    $region25: #{tpu_custom_call.1} parent=1 // pred_fallthru
      _
    // Predicated region
    $region26: #{tpu_custom_call.1} parent=1 // pred_check
      _
    $region27: #{tpu_custom_call.1} parent=1 // pred_check_branch
      %26 = sbr.rel (0) target = $region29
    $region28: #{tpu_custom_call.1} parent=1 // pred_region
      _
    $region29: #{tpu_custom_call.1} parent=1 // pred_fallthru
      _
    %v27 = vld [vmem:[%s0] sm:$0xff]
    %v28 = vld [vmem:[%s0 + $0x8] sm:$0xff]
    %v29 = vld [vmem:[%s0 + $0x10] sm:$0xff]
    %v30 = vld [vmem:[%s0 + $0x18] sm:$0xff]
    %v31 = vld [vmem:[%s0 + $0x20] sm:$0xff]
    %v32 = vld [vmem:[%s0 + $0x28] sm:$0xff]
    %v33 = vld [vmem:[%s0 + $0x30] sm:$0xff]
    %v34 = vld [vmem:[%s0 + $0x38] sm:$0xff]
    %v35 = vld [vmem:[%s0 + $0x40] sm:$0xff]
    %v36 = vld [vmem:[%s0 + $0x48] sm:$0xff]
    %v37 = vld [vmem:[%s0 + $0x50] sm:$0xff]
    %v38 = vld [vmem:[%s0 + $0x58] sm:$0xff]
    %v39 = vld [vmem:[%s0 + $0x60] sm:$0xff]
    %v40 = vld [vmem:[%s0 + $0x68] sm:$0xff]
    %v41 = vld [vmem:[%s0 + $0x70] sm:$0xff]
    %v42 = vld [vmem:[%s0 + $0x78] sm:$0xff]
    %v43 = vld [vmem:[%s1] sm:$0x3]
    %v44 = vld [vmem:[%s2] sm:$0x1]
    %v46 = vperm.slane %v44, 0
    %49 = vset.pattern.permute.xlu0 0
    %50 = vperm.xlu0 %49, %v27
    %v51 = vpop.permute.xlu0 %50
    %54 = vset.pattern.permute.xlu0 0
    %55 = vperm.xlu0 %54, %v28
    %v56 = vpop.permute.xlu0 %55
    %59 = vset.pattern.permute.xlu0 0
    %60 = vperm.xlu0 %59, %v29
    %v61 = vpop.permute.xlu0 %60
    %64 = vset.pattern.permute.xlu0 0
    %65 = vperm.xlu0 %64, %v30
    %v66 = vpop.permute.xlu0 %65
    %69 = vset.pattern.permute.xlu0 0
    %70 = vperm.xlu0 %69, %v31
    %v71 = vpop.permute.xlu0 %70
    %74 = vset.pattern.permute.xlu0 0
    %75 = vperm.xlu0 %74, %v32
    %v76 = vpop.permute.xlu0 %75
    %79 = vset.pattern.permute.xlu0 0
    %80 = vperm.xlu0 %79, %v33
    %v81 = vpop.permute.xlu0 %80
    %84 = vset.pattern.permute.xlu0 0
    %85 = vperm.xlu0 %84, %v34
    %v86 = vpop.permute.xlu0 %85
    %89 = vset.pattern.permute.xlu0 0
    %90 = vperm.xlu0 %89, %v35
    %v91 = vpop.permute.xlu0 %90
    %94 = vset.pattern.permute.xlu0 0
    %95 = vperm.xlu0 %94, %v36
    %v96 = vpop.permute.xlu0 %95
    %99 = vset.pattern.permute.xlu0 0
    %100 = vperm.xlu0 %99, %v37
    %v101 = vpop.permute.xlu0 %100
    %104 = vset.pattern.permute.xlu0 0
    %105 = vperm.xlu0 %104, %v38
    %v106 = vpop.permute.xlu0 %105
    %109 = vset.pattern.permute.xlu0 0
    %110 = vperm.xlu0 %109, %v39
    %v111 = vpop.permute.xlu0 %110
    %114 = vset.pattern.permute.xlu0 0
    %115 = vperm.xlu0 %114, %v40
    %v116 = vpop.permute.xlu0 %115
    %119 = vset.pattern.permute.xlu0 0
    %120 = vperm.xlu0 %119, %v41
    %v121 = vpop.permute.xlu0 %120
    %124 = vset.pattern.permute.xlu0 0
    %125 = vperm.xlu0 %124, %v42
    %v126 = vpop.permute.xlu0 %125
    %v128 = vperm.slane %v43, 0
    %v129 = vmul.f32 %v51, %v128
    %v130 = vmul.f32 %v56, %v128
    %v131 = vmul.f32 %v61, %v128
    %v132 = vmul.f32 %v66, %v128
    %v133 = vmul.f32 %v71, %v128
    %v134 = vmul.f32 %v76, %v128
    %v135 = vmul.f32 %v81, %v128
    %v136 = vmul.f32 %v86, %v128
    %v137 = vmul.f32 %v91, %v128
    %v138 = vmul.f32 %v96, %v128
    %v139 = vmul.f32 %v101, %v128
    %v140 = vmul.f32 %v106, %v128
    %v141 = vmul.f32 %v111, %v128
    %v142 = vmul.f32 %v116, %v128
    %v143 = vmul.f32 %v121, %v128
    %v144 = vmul.f32 %v126, %v128
    %v145 = vadd.f32 %v46, %v129
    %v146 = vadd.f32 %v46, %v130
    %v147 = vadd.f32 %v46, %v131
    %v148 = vadd.f32 %v46, %v132
    %v149 = vadd.f32 %v46, %v133
    %v150 = vadd.f32 %v46, %v134
    %v151 = vadd.f32 %v46, %v135
    %v152 = vadd.f32 %v46, %v136
    %v153 = vadd.f32 %v46, %v137
    %v154 = vadd.f32 %v46, %v138
    %v155 = vadd.f32 %v46, %v139
    %v156 = vadd.f32 %v46, %v140
    %v157 = vadd.f32 %v46, %v141
    %v158 = vadd.f32 %v46, %v142
    %v159 = vadd.f32 %v46, %v143
    %v160 = vadd.f32 %v46, %v144
    %161 = vset.pattern.permute.xlu0 1
    %162 = vperm.xlu0 %161, %v27
    %v163 = vpop.permute.xlu0 %162
    %165 = vset.pattern.permute.xlu0 1
    %166 = vperm.xlu0 %165, %v28
    %v167 = vpop.permute.xlu0 %166
    %169 = vset.pattern.permute.xlu0 1
    %170 = vperm.xlu0 %169, %v29
    %v171 = vpop.permute.xlu0 %170
    %173 = vset.pattern.permute.xlu0 1
    %174 = vperm.xlu0 %173, %v30
    %v175 = vpop.permute.xlu0 %174
    %177 = vset.pattern.permute.xlu0 1
    %178 = vperm.xlu0 %177, %v31
    %v179 = vpop.permute.xlu0 %178
    %181 = vset.pattern.permute.xlu0 1
    %182 = vperm.xlu0 %181, %v32
    %v183 = vpop.permute.xlu0 %182
    %185 = vset.pattern.permute.xlu0 1
    %186 = vperm.xlu0 %185, %v33
    %v187 = vpop.permute.xlu0 %186
    %189 = vset.pattern.permute.xlu0 1
    %190 = vperm.xlu0 %189, %v34
    %v191 = vpop.permute.xlu0 %190
    %193 = vset.pattern.permute.xlu0 1
    %194 = vperm.xlu0 %193, %v35
    %v195 = vpop.permute.xlu0 %194
    %197 = vset.pattern.permute.xlu0 1
    %198 = vperm.xlu0 %197, %v36
    %v199 = vpop.permute.xlu0 %198
    %201 = vset.pattern.permute.xlu0 1
    %202 = vperm.xlu0 %201, %v37
    %v203 = vpop.permute.xlu0 %202
    %205 = vset.pattern.permute.xlu0 1
    %206 = vperm.xlu0 %205, %v38
    %v207 = vpop.permute.xlu0 %206
    %209 = vset.pattern.permute.xlu0 1
    %210 = vperm.xlu0 %209, %v39
    %v211 = vpop.permute.xlu0 %210
    %213 = vset.pattern.permute.xlu0 1
    %214 = vperm.xlu0 %213, %v40
    %v215 = vpop.permute.xlu0 %214
    %217 = vset.pattern.permute.xlu0 1
    %218 = vperm.xlu0 %217, %v41
    %v219 = vpop.permute.xlu0 %218
    %221 = vset.pattern.permute.xlu0 1
    %222 = vperm.xlu0 %221, %v42
    %v223 = vpop.permute.xlu0 %222
    %v225 = vperm.slane %v43, 1
    %v226 = vmul.f32 %v163, %v225
    %v227 = vmul.f32 %v167, %v225
    %v228 = vmul.f32 %v171, %v225
    %v229 = vmul.f32 %v175, %v225
    %v230 = vmul.f32 %v179, %v225
    %v231 = vmul.f32 %v183, %v225
    %v232 = vmul.f32 %v187, %v225
    %v233 = vmul.f32 %v191, %v225
    %v234 = vmul.f32 %v195, %v225
    %v235 = vmul.f32 %v199, %v225
    %v236 = vmul.f32 %v203, %v225
    %v237 = vmul.f32 %v207, %v225
    %v238 = vmul.f32 %v211, %v225
    %v239 = vmul.f32 %v215, %v225
    %v240 = vmul.f32 %v219, %v225
    %v241 = vmul.f32 %v223, %v225
    %v242 = vadd.f32 %v145, %v226
    %v243 = vadd.f32 %v146, %v227
    %v244 = vadd.f32 %v147, %v228
    %v245 = vadd.f32 %v148, %v229
    %v246 = vadd.f32 %v149, %v230
    %v247 = vadd.f32 %v150, %v231
    %v248 = vadd.f32 %v151, %v232
    %v249 = vadd.f32 %v152, %v233
    %v250 = vadd.f32 %v153, %v234
    %v251 = vadd.f32 %v154, %v235
    %v252 = vadd.f32 %v155, %v236
    %v253 = vadd.f32 %v156, %v237
    %v254 = vadd.f32 %v157, %v238
    %v255 = vadd.f32 %v158, %v239
    %v256 = vadd.f32 %v159, %v240
    %v257 = vadd.f32 %v160, %v241
    %v258 = vxor.u32 %v242, 2147483648
    %v259 = vxor.u32 %v243, 2147483648
    %v260 = vxor.u32 %v244, 2147483648
    %v261 = vxor.u32 %v245, 2147483648
    %v262 = vxor.u32 %v246, 2147483648
    %v263 = vxor.u32 %v247, 2147483648
    %v264 = vxor.u32 %v248, 2147483648
    %v265 = vxor.u32 %v249, 2147483648
    %v266 = vxor.u32 %v250, 2147483648
    %v267 = vxor.u32 %v251, 2147483648
    %v268 = vxor.u32 %v252, 2147483648
    %v269 = vxor.u32 %v253, 2147483648
    %v270 = vxor.u32 %v254, 2147483648
    %v271 = vxor.u32 %v255, 2147483648
    %v272 = vxor.u32 %v256, 2147483648
    %v273 = vxor.u32 %v257, 2147483648
    %v274 = vmul.f32 %v258, 1.442695
    %v275 = vpow.pop %v274
    %v276 = vmul.f32 %v259, 1.442695
    %v277 = vpow.pop %v276
    %v278 = vmul.f32 %v260, 1.442695
    %v279 = vpow.pop %v278
    %v280 = vmul.f32 %v261, 1.442695
    %v281 = vpow.pop %v280
    %v282 = vmul.f32 %v262, 1.442695
    %v283 = vpow.pop %v282
    %v284 = vmul.f32 %v263, 1.442695
    %v285 = vpow.pop %v284
    %v286 = vmul.f32 %v264, 1.442695
    %v287 = vpow.pop %v286
    %v288 = vmul.f32 %v265, 1.442695
    %v289 = vpow.pop %v288
    %v290 = vmul.f32 %v266, 1.442695
    %v291 = vpow.pop %v290
    %v292 = vmul.f32 %v267, 1.442695
    %v293 = vpow.pop %v292
    %v294 = vmul.f32 %v268, 1.442695
    %v295 = vpow.pop %v294
    %v296 = vmul.f32 %v269, 1.442695
    %v297 = vpow.pop %v296
    %v298 = vmul.f32 %v270, 1.442695
    %v299 = vpow.pop %v298
    %v300 = vmul.f32 %v271, 1.442695
    %v301 = vpow.pop %v300
    %v302 = vmul.f32 %v272, 1.442695
    %v303 = vpow.pop %v302
    %v304 = vmul.f32 %v273, 1.442695
    %v305 = vpow.pop %v304
    %v306 = vadd.f32 %v275, 1.0
    %v307 = vadd.f32 %v277, 1.0
    %v308 = vadd.f32 %v279, 1.0
    %v309 = vadd.f32 %v281, 1.0
    %v310 = vadd.f32 %v283, 1.0
    %v311 = vadd.f32 %v285, 1.0
    %v312 = vadd.f32 %v287, 1.0
    %v313 = vadd.f32 %v289, 1.0
    %v314 = vadd.f32 %v291, 1.0
    %v315 = vadd.f32 %v293, 1.0
    %v316 = vadd.f32 %v295, 1.0
    %v317 = vadd.f32 %v297, 1.0
    %v318 = vadd.f32 %v299, 1.0
    %v319 = vadd.f32 %v301, 1.0
    %v320 = vadd.f32 %v303, 1.0
    %v321 = vadd.f32 %v305, 1.0
    %v322 = vrcp.pop %v306
    %v323 = vmul.f32 %v306, %v322
    %v324 = vsub.f32 1.0, %v323
    %v325 = vmul.f32 %v322, %v324
    %v326 = vadd.f32 %v322, %v325
    %vm327 = vweird.f32 %v306
    %vm328 = vweird.f32 %v322
    %vm329 = vmor %vm327, %vm328
    %v330 = vsel %vm329, %v322, %v326
    %v331 = vand.u32 2147483647, %v306
    %vm332 = vcmp.eq.f32.partialorder %v331, 8.507059e+37
    %v333 = vand.u32 %v306, 2147483648
    %v334 = vor.u32 1.1754944e-38, %v333
    %v335 = vsel %vm332, %v334, %v330
    %v336 = vmul.f32 1.0, %v335
    %v337 = vrcp.pop %v307
    %v338 = vmul.f32 %v307, %v337
    %v339 = vsub.f32 1.0, %v338
    %v340 = vmul.f32 %v337, %v339
    %v341 = vadd.f32 %v337, %v340
    %vm342 = vweird.f32 %v307
    %vm343 = vweird.f32 %v337
    %vm344 = vmor %vm342, %vm343
    %v345 = vsel %vm344, %v337, %v341
    %v346 = vand.u32 2147483647, %v307
    %vm347 = vcmp.eq.f32.partialorder %v346, 8.507059e+37
    %v348 = vand.u32 %v307, 2147483648
    %v349 = vor.u32 1.1754944e-38, %v348
    %v350 = vsel %vm347, %v349, %v345
    %v351 = vmul.f32 1.0, %v350
    %v352 = vrcp.pop %v308
    %v353 = vmul.f32 %v308, %v352
    %v354 = vsub.f32 1.0, %v353
    %v355 = vmul.f32 %v352, %v354
    %v356 = vadd.f32 %v352, %v355
    %vm357 = vweird.f32 %v308
    %vm358 = vweird.f32 %v352
    %vm359 = vmor %vm357, %vm358
    %v360 = vsel %vm359, %v352, %v356
    %v361 = vand.u32 2147483647, %v308
    %vm362 = vcmp.eq.f32.partialorder %v361, 8.507059e+37
    %v363 = vand.u32 %v308, 2147483648
    %v364 = vor.u32 1.1754944e-38, %v363
    %v365 = vsel %vm362, %v364, %v360
    %v366 = vmul.f32 1.0, %v365
    %v367 = vrcp.pop %v309
    %v368 = vmul.f32 %v309, %v367
    %v369 = vsub.f32 1.0, %v368
    %v370 = vmul.f32 %v367, %v369
    %v371 = vadd.f32 %v367, %v370
    %vm372 = vweird.f32 %v309
    %vm373 = vweird.f32 %v367
    %vm374 = vmor %vm372, %vm373
    %v375 = vsel %vm374, %v367, %v371
    %v376 = vand.u32 2147483647, %v309
    %vm377 = vcmp.eq.f32.partialorder %v376, 8.507059e+37
    %v378 = vand.u32 %v309, 2147483648
    %v379 = vor.u32 1.1754944e-38, %v378
    %v380 = vsel %vm377, %v379, %v375
    %v381 = vmul.f32 1.0, %v380
    %v382 = vrcp.pop %v310
    %v383 = vmul.f32 %v310, %v382
    %v384 = vsub.f32 1.0, %v383
    %v385 = vmul.f32 %v382, %v384
    %v386 = vadd.f32 %v382, %v385
    %vm387 = vweird.f32 %v310
    %vm388 = vweird.f32 %v382
    %vm389 = vmor %vm387, %vm388
    %v390 = vsel %vm389, %v382, %v386
    %v391 = vand.u32 2147483647, %v310
    %vm392 = vcmp.eq.f32.partialorder %v391, 8.507059e+37
    %v393 = vand.u32 %v310, 2147483648
    %v394 = vor.u32 1.1754944e-38, %v393
    %v395 = vsel %vm392, %v394, %v390
    %v396 = vmul.f32 1.0, %v395
    %v397 = vrcp.pop %v311
    %v398 = vmul.f32 %v311, %v397
    %v399 = vsub.f32 1.0, %v398
    %v400 = vmul.f32 %v397, %v399
    %v401 = vadd.f32 %v397, %v400
    %vm402 = vweird.f32 %v311
    %vm403 = vweird.f32 %v397
    %vm404 = vmor %vm402, %vm403
    %v405 = vsel %vm404, %v397, %v401
    %v406 = vand.u32 2147483647, %v311
    %vm407 = vcmp.eq.f32.partialorder %v406, 8.507059e+37
    %v408 = vand.u32 %v311, 2147483648
    %v409 = vor.u32 1.1754944e-38, %v408
    %v410 = vsel %vm407, %v409, %v405
    %v411 = vmul.f32 1.0, %v410
    %v412 = vrcp.pop %v312
    %v413 = vmul.f32 %v312, %v412
    %v414 = vsub.f32 1.0, %v413
    %v415 = vmul.f32 %v412, %v414
    %v416 = vadd.f32 %v412, %v415
    %vm417 = vweird.f32 %v312
    %vm418 = vweird.f32 %v412
    %vm419 = vmor %vm417, %vm418
    %v420 = vsel %vm419, %v412, %v416
    %v421 = vand.u32 2147483647, %v312
    %vm422 = vcmp.eq.f32.partialorder %v421, 8.507059e+37
    %v423 = vand.u32 %v312, 2147483648
    %v424 = vor.u32 1.1754944e-38, %v423
    %v425 = vsel %vm422, %v424, %v420
    %v426 = vmul.f32 1.0, %v425
    %v427 = vrcp.pop %v313
    %v428 = vmul.f32 %v313, %v427
    %v429 = vsub.f32 1.0, %v428
    %v430 = vmul.f32 %v427, %v429
    %v431 = vadd.f32 %v427, %v430
    %vm432 = vweird.f32 %v313
    %vm433 = vweird.f32 %v427
    %vm434 = vmor %vm432, %vm433
    %v435 = vsel %vm434, %v427, %v431
    %v436 = vand.u32 2147483647, %v313
    %vm437 = vcmp.eq.f32.partialorder %v436, 8.507059e+37
    %v438 = vand.u32 %v313, 2147483648
    %v439 = vor.u32 1.1754944e-38, %v438
    %v440 = vsel %vm437, %v439, %v435
    %v441 = vmul.f32 1.0, %v440
    %v442 = vrcp.pop %v314
    %v443 = vmul.f32 %v314, %v442
    %v444 = vsub.f32 1.0, %v443
    %v445 = vmul.f32 %v442, %v444
    %v446 = vadd.f32 %v442, %v445
    %vm447 = vweird.f32 %v314
    %vm448 = vweird.f32 %v442
    %vm449 = vmor %vm447, %vm448
    %v450 = vsel %vm449, %v442, %v446
    %v451 = vand.u32 2147483647, %v314
    %vm452 = vcmp.eq.f32.partialorder %v451, 8.507059e+37
    %v453 = vand.u32 %v314, 2147483648
    %v454 = vor.u32 1.1754944e-38, %v453
    %v455 = vsel %vm452, %v454, %v450
    %v456 = vmul.f32 1.0, %v455
    %v457 = vrcp.pop %v315
    %v458 = vmul.f32 %v315, %v457
    %v459 = vsub.f32 1.0, %v458
    %v460 = vmul.f32 %v457, %v459
    %v461 = vadd.f32 %v457, %v460
    %vm462 = vweird.f32 %v315
    %vm463 = vweird.f32 %v457
    %vm464 = vmor %vm462, %vm463
    %v465 = vsel %vm464, %v457, %v461
    %v466 = vand.u32 2147483647, %v315
    %vm467 = vcmp.eq.f32.partialorder %v466, 8.507059e+37
    %v468 = vand.u32 %v315, 2147483648
    %v469 = vor.u32 1.1754944e-38, %v468
    %v470 = vsel %vm467, %v469, %v465
    %v471 = vmul.f32 1.0, %v470
    %v472 = vrcp.pop %v316
    %v473 = vmul.f32 %v316, %v472
    %v474 = vsub.f32 1.0, %v473
    %v475 = vmul.f32 %v472, %v474
    %v476 = vadd.f32 %v472, %v475
    %vm477 = vweird.f32 %v316
    %vm478 = vweird.f32 %v472
    %vm479 = vmor %vm477, %vm478
    %v480 = vsel %vm479, %v472, %v476
    %v481 = vand.u32 2147483647, %v316
    %vm482 = vcmp.eq.f32.partialorder %v481, 8.507059e+37
    %v483 = vand.u32 %v316, 2147483648
    %v484 = vor.u32 1.1754944e-38, %v483
    %v485 = vsel %vm482, %v484, %v480
    %v486 = vmul.f32 1.0, %v485
    %v487 = vrcp.pop %v317
    %v488 = vmul.f32 %v317, %v487
    %v489 = vsub.f32 1.0, %v488
    %v490 = vmul.f32 %v487, %v489
    %v491 = vadd.f32 %v487, %v490
    %vm492 = vweird.f32 %v317
    %vm493 = vweird.f32 %v487
    %vm494 = vmor %vm492, %vm493
    %v495 = vsel %vm494, %v487, %v491
    %v496 = vand.u32 2147483647, %v317
    %vm497 = vcmp.eq.f32.partialorder %v496, 8.507059e+37
    %v498 = vand.u32 %v317, 2147483648
    %v499 = vor.u32 1.1754944e-38, %v498
    %v500 = vsel %vm497, %v499, %v495
    %v501 = vmul.f32 1.0, %v500
    %v502 = vrcp.pop %v318
    %v503 = vmul.f32 %v318, %v502
    %v504 = vsub.f32 1.0, %v503
    %v505 = vmul.f32 %v502, %v504
    %v506 = vadd.f32 %v502, %v505
    %vm507 = vweird.f32 %v318
    %vm508 = vweird.f32 %v502
    %vm509 = vmor %vm507, %vm508
    %v510 = vsel %vm509, %v502, %v506
    %v511 = vand.u32 2147483647, %v318
    %vm512 = vcmp.eq.f32.partialorder %v511, 8.507059e+37
    %v513 = vand.u32 %v318, 2147483648
    %v514 = vor.u32 1.1754944e-38, %v513
    %v515 = vsel %vm512, %v514, %v510
    %v516 = vmul.f32 1.0, %v515
    %v517 = vrcp.pop %v319
    %v518 = vmul.f32 %v319, %v517
    %v519 = vsub.f32 1.0, %v518
    %v520 = vmul.f32 %v517, %v519
    %v521 = vadd.f32 %v517, %v520
    %vm522 = vweird.f32 %v319
    %vm523 = vweird.f32 %v517
    %vm524 = vmor %vm522, %vm523
    %v525 = vsel %vm524, %v517, %v521
    %v526 = vand.u32 2147483647, %v319
    %vm527 = vcmp.eq.f32.partialorder %v526, 8.507059e+37
    %v528 = vand.u32 %v319, 2147483648
    %v529 = vor.u32 1.1754944e-38, %v528
    %v530 = vsel %vm527, %v529, %v525
    %v531 = vmul.f32 1.0, %v530
    %v532 = vrcp.pop %v320
    %v533 = vmul.f32 %v320, %v532
    %v534 = vsub.f32 1.0, %v533
    %v535 = vmul.f32 %v532, %v534
    %v536 = vadd.f32 %v532, %v535
    %vm537 = vweird.f32 %v320
    %vm538 = vweird.f32 %v532
    %vm539 = vmor %vm537, %vm538
    %v540 = vsel %vm539, %v532, %v536
    %v541 = vand.u32 2147483647, %v320
    %vm542 = vcmp.eq.f32.partialorder %v541, 8.507059e+37
    %v543 = vand.u32 %v320, 2147483648
    %v544 = vor.u32 1.1754944e-38, %v543
    %v545 = vsel %vm542, %v544, %v540
    %v546 = vmul.f32 1.0, %v545
    %v547 = vrcp.pop %v321
    %v548 = vmul.f32 %v321, %v547
    %v549 = vsub.f32 1.0, %v548
    %v550 = vmul.f32 %v547, %v549
    %v551 = vadd.f32 %v547, %v550
    %vm552 = vweird.f32 %v321
    %vm553 = vweird.f32 %v547
    %vm554 = vmor %vm552, %vm553
    %v555 = vsel %vm554, %v547, %v551
    %v556 = vand.u32 2147483647, %v321
    %vm557 = vcmp.eq.f32.partialorder %v556, 8.507059e+37
    %v558 = vand.u32 %v321, 2147483648
    %v559 = vor.u32 1.1754944e-38, %v558
    %v560 = vsel %vm557, %v559, %v555
    %v561 = vmul.f32 1.0, %v560
    %v562 = vld [vmem:[%s3] sm:$0xff]
    %v563 = vld [vmem:[%s3 + $0x8] sm:$0xff]
    %v564 = vld [vmem:[%s3 + $0x10] sm:$0xff]
    %v565 = vld [vmem:[%s3 + $0x18] sm:$0xff]
    %v566 = vld [vmem:[%s4] sm:$0x1]
    %v568 = vperm.slane %v566, 0
    %vm570 = vcmask 261120
    %v572 = vsel %vm570, %v336, 0
    %v575 = vsel %vm570, %v351, 0
    %v578 = vsel %vm570, %v366, 0
    %v581 = vsel %vm570, %v381, 0
    %v584 = vsel %vm570, %v396, 0
    %v587 = vsel %vm570, %v411, 0
    %v590 = vsel %vm570, %v426, 0
    %v593 = vsel %vm570, %v441, 0
    %v596 = vsel %vm570, %v456, 0
    %v599 = vsel %vm570, %v471, 0
    %v602 = vsel %vm570, %v486, 0
    %v605 = vsel %vm570, %v501, 0
    %v608 = vsel %vm570, %v516, 0
    %v611 = vsel %vm570, %v531, 0
    %v614 = vsel %vm570, %v546, 0
    %v617 = vsel %vm570, %v561, 0
    %619 = vmatpush.msra.mxu0 0.0
    %620 = vmatpush.msra.mxu0 0.0
    %621 = vmatpush.msra.mxu0 0.0
    %622 = vmatpush.msra.mxu0 0.0
    %623 = vmatpush.msra.mxu0 0.0
    %624 = vmatpush.msra.mxu0 0.0
    %625 = vmatpush.msra.mxu0 0.0
    %626 = vmatpush.msra.mxu0 0.0
    %627 = vmatpush.msra.mxu0 0.0
    %628 = vmatpush.msra.mxu0 0.0
    %629 = vmatpush.msra.mxu0 0.0
    %630 = vmatpush.msra.mxu0 0.0
    %631 = vmatpush.msra.mxu0 %v565
    %632 = vmatpush.msra.mxu0 %v564
    %633 = vmatpush.msra.mxu0 %v563
    %634 = vmatpush.msra.mxu0 %v562
    %635 = vmatmul.f32.gmra.mxu0 %v572
    %v636 = vpop.f32.mrf.mxu0
    %v637 = vadd.f32 %v568, %v636
    %638 = vmatmul.f32.gmra.mxu0 %v575
    %v639 = vpop.f32.mrf.mxu0
    %v640 = vadd.f32 %v568, %v639
    %641 = vmatmul.f32.gmra.mxu0 %v578
    %v642 = vpop.f32.mrf.mxu0
    %v643 = vadd.f32 %v568, %v642
    %644 = vmatmul.f32.gmra.mxu0 %v581
    %v645 = vpop.f32.mrf.mxu0
    %v646 = vadd.f32 %v568, %v645
    %647 = vmatmul.f32.gmra.mxu0 %v584
    %v648 = vpop.f32.mrf.mxu0
    %v649 = vadd.f32 %v568, %v648
    %650 = vmatmul.f32.gmra.mxu0 %v587
    %v651 = vpop.f32.mrf.mxu0
    %v652 = vadd.f32 %v568, %v651
    %653 = vmatmul.f32.gmra.mxu0 %v590
    %v654 = vpop.f32.mrf.mxu0
    %v655 = vadd.f32 %v568, %v654
    %656 = vmatmul.f32.gmra.mxu0 %v593
    %v657 = vpop.f32.mrf.mxu0
    %v658 = vadd.f32 %v568, %v657
    %659 = vmatmul.f32.gmra.mxu0 %v596
    %v660 = vpop.f32.mrf.mxu0
    %v661 = vadd.f32 %v568, %v660
    %662 = vmatmul.f32.gmra.mxu0 %v599
    %v663 = vpop.f32.mrf.mxu0
    %v664 = vadd.f32 %v568, %v663
    %665 = vmatmul.f32.gmra.mxu0 %v602
    %v666 = vpop.f32.mrf.mxu0
    %v667 = vadd.f32 %v568, %v666
    %668 = vmatmul.f32.gmra.mxu0 %v605
    %v669 = vpop.f32.mrf.mxu0
    %v670 = vadd.f32 %v568, %v669
    %671 = vmatmul.f32.gmra.mxu0 %v608
    %v672 = vpop.f32.mrf.mxu0
    %v673 = vadd.f32 %v568, %v672
    %674 = vmatmul.f32.gmra.mxu0 %v611
    %v675 = vpop.f32.mrf.mxu0
    %v676 = vadd.f32 %v568, %v675
    %677 = vmatmul.f32.gmra.mxu0 %v614
    %v678 = vpop.f32.mrf.mxu0
    %v679 = vadd.f32 %v568, %v678
    %680 = vmatmul.f32.gmra.mxu0 %v617
    %v681 = vpop.f32.mrf.mxu0
    %v682 = vadd.f32 %v568, %v681
    %683 = vdwg.mxu0
    %v684 = vxor.u32 %v637, 2147483648
    %v685 = vxor.u32 %v640, 2147483648
    %v686 = vxor.u32 %v643, 2147483648
    %v687 = vxor.u32 %v646, 2147483648
    %v688 = vxor.u32 %v649, 2147483648
    %v689 = vxor.u32 %v652, 2147483648
    %v690 = vxor.u32 %v655, 2147483648
    %v691 = vxor.u32 %v658, 2147483648
    %v692 = vxor.u32 %v661, 2147483648
    %v693 = vxor.u32 %v664, 2147483648
    %v694 = vxor.u32 %v667, 2147483648
    %v695 = vxor.u32 %v670, 2147483648
    %v696 = vxor.u32 %v673, 2147483648
    %v697 = vxor.u32 %v676, 2147483648
    %v698 = vxor.u32 %v679, 2147483648
    %v699 = vxor.u32 %v682, 2147483648
    %v700 = vmul.f32 %v684, 1.442695
    %v701 = vpow.pop %v700
    %v702 = vmul.f32 %v685, 1.442695
    %v703 = vpow.pop %v702
    %v704 = vmul.f32 %v686, 1.442695
    %v705 = vpow.pop %v704
    %v706 = vmul.f32 %v687, 1.442695
    %v707 = vpow.pop %v706
    %v708 = vmul.f32 %v688, 1.442695
    %v709 = vpow.pop %v708
    %v710 = vmul.f32 %v689, 1.442695
    %v711 = vpow.pop %v710
    %v712 = vmul.f32 %v690, 1.442695
    %v713 = vpow.pop %v712
    %v714 = vmul.f32 %v691, 1.442695
    %v715 = vpow.pop %v714
    %v716 = vmul.f32 %v692, 1.442695
    %v717 = vpow.pop %v716
    %v718 = vmul.f32 %v693, 1.442695
    %v719 = vpow.pop %v718
    %v720 = vmul.f32 %v694, 1.442695
    %v721 = vpow.pop %v720
    %v722 = vmul.f32 %v695, 1.442695
    %v723 = vpow.pop %v722
    %v724 = vmul.f32 %v696, 1.442695
    %v725 = vpow.pop %v724
    %v726 = vmul.f32 %v697, 1.442695
    %v727 = vpow.pop %v726
    %v728 = vmul.f32 %v698, 1.442695
    %v729 = vpow.pop %v728
    %v730 = vmul.f32 %v699, 1.442695
    %v731 = vpow.pop %v730
    %v732 = vadd.f32 %v701, 1.0
    %v733 = vadd.f32 %v703, 1.0
    %v734 = vadd.f32 %v705, 1.0
    %v735 = vadd.f32 %v707, 1.0
    %v736 = vadd.f32 %v709, 1.0
    %v737 = vadd.f32 %v711, 1.0
    %v738 = vadd.f32 %v713, 1.0
    %v739 = vadd.f32 %v715, 1.0
    %v740 = vadd.f32 %v717, 1.0
    %v741 = vadd.f32 %v719, 1.0
    %v742 = vadd.f32 %v721, 1.0
    %v743 = vadd.f32 %v723, 1.0
    %v744 = vadd.f32 %v725, 1.0
    %v745 = vadd.f32 %v727, 1.0
    %v746 = vadd.f32 %v729, 1.0
    %v747 = vadd.f32 %v731, 1.0
    %v748 = vrcp.pop %v732
    %v749 = vmul.f32 %v732, %v748
    %v750 = vsub.f32 1.0, %v749
    %v751 = vmul.f32 %v748, %v750
    %v752 = vadd.f32 %v748, %v751
    %vm753 = vweird.f32 %v732
    %vm754 = vweird.f32 %v748
    %vm755 = vmor %vm753, %vm754
    %v756 = vsel %vm755, %v748, %v752
    %v757 = vand.u32 2147483647, %v732
    %vm758 = vcmp.eq.f32.partialorder %v757, 8.507059e+37
    %v759 = vand.u32 %v732, 2147483648
    %v760 = vor.u32 1.1754944e-38, %v759
    %v761 = vsel %vm758, %v760, %v756
    %v762 = vmul.f32 1.0, %v761
    %v763 = vrcp.pop %v733
    %v764 = vmul.f32 %v733, %v763
    %v765 = vsub.f32 1.0, %v764
    %v766 = vmul.f32 %v763, %v765
    %v767 = vadd.f32 %v763, %v766
    %vm768 = vweird.f32 %v733
    %vm769 = vweird.f32 %v763
    %vm770 = vmor %vm768, %vm769
    %v771 = vsel %vm770, %v763, %v767
    %v772 = vand.u32 2147483647, %v733
    %vm773 = vcmp.eq.f32.partialorder %v772, 8.507059e+37
    %v774 = vand.u32 %v733, 2147483648
    %v775 = vor.u32 1.1754944e-38, %v774
    %v776 = vsel %vm773, %v775, %v771
    %v777 = vmul.f32 1.0, %v776
    %v778 = vrcp.pop %v734
    %v779 = vmul.f32 %v734, %v778
    %v780 = vsub.f32 1.0, %v779
    %v781 = vmul.f32 %v778, %v780
    %v782 = vadd.f32 %v778, %v781
    %vm783 = vweird.f32 %v734
    %vm784 = vweird.f32 %v778
    %vm785 = vmor %vm783, %vm784
    %v786 = vsel %vm785, %v778, %v782
    %v787 = vand.u32 2147483647, %v734
    %vm788 = vcmp.eq.f32.partialorder %v787, 8.507059e+37
    %v789 = vand.u32 %v734, 2147483648
    %v790 = vor.u32 1.1754944e-38, %v789
    %v791 = vsel %vm788, %v790, %v786
    %v792 = vmul.f32 1.0, %v791
    %v793 = vrcp.pop %v735
    %v794 = vmul.f32 %v735, %v793
    %v795 = vsub.f32 1.0, %v794
    %v796 = vmul.f32 %v793, %v795
    %v797 = vadd.f32 %v793, %v796
    %vm798 = vweird.f32 %v735
    %vm799 = vweird.f32 %v793
    %vm800 = vmor %vm798, %vm799
    %v801 = vsel %vm800, %v793, %v797
    %v802 = vand.u32 2147483647, %v735
    %vm803 = vcmp.eq.f32.partialorder %v802, 8.507059e+37
    %v804 = vand.u32 %v735, 2147483648
    %v805 = vor.u32 1.1754944e-38, %v804
    %v806 = vsel %vm803, %v805, %v801
    %v807 = vmul.f32 1.0, %v806
    %v808 = vrcp.pop %v736
    %v809 = vmul.f32 %v736, %v808
    %v810 = vsub.f32 1.0, %v809
    %v811 = vmul.f32 %v808, %v810
    %v812 = vadd.f32 %v808, %v811
    %vm813 = vweird.f32 %v736
    %vm814 = vweird.f32 %v808
    %vm815 = vmor %vm813, %vm814
    %v816 = vsel %vm815, %v808, %v812
    %v817 = vand.u32 2147483647, %v736
    %vm818 = vcmp.eq.f32.partialorder %v817, 8.507059e+37
    %v819 = vand.u32 %v736, 2147483648
    %v820 = vor.u32 1.1754944e-38, %v819
    %v821 = vsel %vm818, %v820, %v816
    %v822 = vmul.f32 1.0, %v821
    %v823 = vrcp.pop %v737
    %v824 = vmul.f32 %v737, %v823
    %v825 = vsub.f32 1.0, %v824
    %v826 = vmul.f32 %v823, %v825
    %v827 = vadd.f32 %v823, %v826
    %vm828 = vweird.f32 %v737
    %vm829 = vweird.f32 %v823
    %vm830 = vmor %vm828, %vm829
    %v831 = vsel %vm830, %v823, %v827
    %v832 = vand.u32 2147483647, %v737
    %vm833 = vcmp.eq.f32.partialorder %v832, 8.507059e+37
    %v834 = vand.u32 %v737, 2147483648
    %v835 = vor.u32 1.1754944e-38, %v834
    %v836 = vsel %vm833, %v835, %v831
    %v837 = vmul.f32 1.0, %v836
    %v838 = vrcp.pop %v738
    %v839 = vmul.f32 %v738, %v838
    %v840 = vsub.f32 1.0, %v839
    %v841 = vmul.f32 %v838, %v840
    %v842 = vadd.f32 %v838, %v841
    %vm843 = vweird.f32 %v738
    %vm844 = vweird.f32 %v838
    %vm845 = vmor %vm843, %vm844
    %v846 = vsel %vm845, %v838, %v842
    %v847 = vand.u32 2147483647, %v738
    %vm848 = vcmp.eq.f32.partialorder %v847, 8.507059e+37
    %v849 = vand.u32 %v738, 2147483648
    %v850 = vor.u32 1.1754944e-38, %v849
    %v851 = vsel %vm848, %v850, %v846
    %v852 = vmul.f32 1.0, %v851
    %v853 = vrcp.pop %v739
    %v854 = vmul.f32 %v739, %v853
    %v855 = vsub.f32 1.0, %v854
    %v856 = vmul.f32 %v853, %v855
    %v857 = vadd.f32 %v853, %v856
    %vm858 = vweird.f32 %v739
    %vm859 = vweird.f32 %v853
    %vm860 = vmor %vm858, %vm859
    %v861 = vsel %vm860, %v853, %v857
    %v862 = vand.u32 2147483647, %v739
    %vm863 = vcmp.eq.f32.partialorder %v862, 8.507059e+37
    %v864 = vand.u32 %v739, 2147483648
    %v865 = vor.u32 1.1754944e-38, %v864
    %v866 = vsel %vm863, %v865, %v861
    %v867 = vmul.f32 1.0, %v866
    %v868 = vrcp.pop %v740
    %v869 = vmul.f32 %v740, %v868
    %v870 = vsub.f32 1.0, %v869
    %v871 = vmul.f32 %v868, %v870
    %v872 = vadd.f32 %v868, %v871
    %vm873 = vweird.f32 %v740
    %vm874 = vweird.f32 %v868
    %vm875 = vmor %vm873, %vm874
    %v876 = vsel %vm875, %v868, %v872
    %v877 = vand.u32 2147483647, %v740
    %vm878 = vcmp.eq.f32.partialorder %v877, 8.507059e+37
    %v879 = vand.u32 %v740, 2147483648
    %v880 = vor.u32 1.1754944e-38, %v879
    %v881 = vsel %vm878, %v880, %v876
    %v882 = vmul.f32 1.0, %v881
    %v883 = vrcp.pop %v741
    %v884 = vmul.f32 %v741, %v883
    %v885 = vsub.f32 1.0, %v884
    %v886 = vmul.f32 %v883, %v885
    %v887 = vadd.f32 %v883, %v886
    %vm888 = vweird.f32 %v741
    %vm889 = vweird.f32 %v883
    %vm890 = vmor %vm888, %vm889
    %v891 = vsel %vm890, %v883, %v887
    %v892 = vand.u32 2147483647, %v741
    %vm893 = vcmp.eq.f32.partialorder %v892, 8.507059e+37
    %v894 = vand.u32 %v741, 2147483648
    %v895 = vor.u32 1.1754944e-38, %v894
    %v896 = vsel %vm893, %v895, %v891
    %v897 = vmul.f32 1.0, %v896
    %v898 = vrcp.pop %v742
    %v899 = vmul.f32 %v742, %v898
    %v900 = vsub.f32 1.0, %v899
    %v901 = vmul.f32 %v898, %v900
    %v902 = vadd.f32 %v898, %v901
    %vm903 = vweird.f32 %v742
    %vm904 = vweird.f32 %v898
    %vm905 = vmor %vm903, %vm904
    %v906 = vsel %vm905, %v898, %v902
    %v907 = vand.u32 2147483647, %v742
    %vm908 = vcmp.eq.f32.partialorder %v907, 8.507059e+37
    %v909 = vand.u32 %v742, 2147483648
    %v910 = vor.u32 1.1754944e-38, %v909
    %v911 = vsel %vm908, %v910, %v906
    %v912 = vmul.f32 1.0, %v911
    %v913 = vrcp.pop %v743
    %v914 = vmul.f32 %v743, %v913
    %v915 = vsub.f32 1.0, %v914
    %v916 = vmul.f32 %v913, %v915
    %v917 = vadd.f32 %v913, %v916
    %vm918 = vweird.f32 %v743
    %vm919 = vweird.f32 %v913
    %vm920 = vmor %vm918, %vm919
    %v921 = vsel %vm920, %v913, %v917
    %v922 = vand.u32 2147483647, %v743
    %vm923 = vcmp.eq.f32.partialorder %v922, 8.507059e+37
    %v924 = vand.u32 %v743, 2147483648
    %v925 = vor.u32 1.1754944e-38, %v924
    %v926 = vsel %vm923, %v925, %v921
    %v927 = vmul.f32 1.0, %v926
    %v928 = vrcp.pop %v744
    %v929 = vmul.f32 %v744, %v928
    %v930 = vsub.f32 1.0, %v929
    %v931 = vmul.f32 %v928, %v930
    %v932 = vadd.f32 %v928, %v931
    %vm933 = vweird.f32 %v744
    %vm934 = vweird.f32 %v928
    %vm935 = vmor %vm933, %vm934
    %v936 = vsel %vm935, %v928, %v932
    %v937 = vand.u32 2147483647, %v744
    %vm938 = vcmp.eq.f32.partialorder %v937, 8.507059e+37
    %v939 = vand.u32 %v744, 2147483648
    %v940 = vor.u32 1.1754944e-38, %v939
    %v941 = vsel %vm938, %v940, %v936
    %v942 = vmul.f32 1.0, %v941
    %v943 = vrcp.pop %v745
    %v944 = vmul.f32 %v745, %v943
    %v945 = vsub.f32 1.0, %v944
    %v946 = vmul.f32 %v943, %v945
    %v947 = vadd.f32 %v943, %v946
    %vm948 = vweird.f32 %v745
    %vm949 = vweird.f32 %v943
    %vm950 = vmor %vm948, %vm949
    %v951 = vsel %vm950, %v943, %v947
    %v952 = vand.u32 2147483647, %v745
    %vm953 = vcmp.eq.f32.partialorder %v952, 8.507059e+37
    %v954 = vand.u32 %v745, 2147483648
    %v955 = vor.u32 1.1754944e-38, %v954
    %v956 = vsel %vm953, %v955, %v951
    %v957 = vmul.f32 1.0, %v956
    %v958 = vrcp.pop %v746
    %v959 = vmul.f32 %v746, %v958
    %v960 = vsub.f32 1.0, %v959
    %v961 = vmul.f32 %v958, %v960
    %v962 = vadd.f32 %v958, %v961
    %vm963 = vweird.f32 %v746
    %vm964 = vweird.f32 %v958
    %vm965 = vmor %vm963, %vm964
    %v966 = vsel %vm965, %v958, %v962
    %v967 = vand.u32 2147483647, %v746
    %vm968 = vcmp.eq.f32.partialorder %v967, 8.507059e+37
    %v969 = vand.u32 %v746, 2147483648
    %v970 = vor.u32 1.1754944e-38, %v969
    %v971 = vsel %vm968, %v970, %v966
    %v972 = vmul.f32 1.0, %v971
    %v973 = vrcp.pop %v747
    %v974 = vmul.f32 %v747, %v973
    %v975 = vsub.f32 1.0, %v974
    %v976 = vmul.f32 %v973, %v975
    %v977 = vadd.f32 %v973, %v976
    %vm978 = vweird.f32 %v747
    %vm979 = vweird.f32 %v973
    %vm980 = vmor %vm978, %vm979
    %v981 = vsel %vm980, %v973, %v977
    %v982 = vand.u32 2147483647, %v747
    %vm983 = vcmp.eq.f32.partialorder %v982, 8.507059e+37
    %v984 = vand.u32 %v747, 2147483648
    %v985 = vor.u32 1.1754944e-38, %v984
    %v986 = vsel %vm983, %v985, %v981
    %v987 = vmul.f32 1.0, %v986
    %v988 = vld [vmem:[%s5] sm:$0xff]
    %v989 = vld [vmem:[%s5 + $0x8] sm:$0xff]
    %v990 = vld [vmem:[%s6] sm:$0x1]
    %v992 = vperm.slane %v990, 0
    %vm994 = vcmask 130048
    %v996 = vsel %vm994, %v762, 0
    %v999 = vsel %vm994, %v777, 0
    %v1002 = vsel %vm994, %v792, 0
    %v1005 = vsel %vm994, %v807, 0
    %v1008 = vsel %vm994, %v822, 0
    %v1011 = vsel %vm994, %v837, 0
    %v1014 = vsel %vm994, %v852, 0
    %v1017 = vsel %vm994, %v867, 0
    %v1020 = vsel %vm994, %v882, 0
    %v1023 = vsel %vm994, %v897, 0
    %v1026 = vsel %vm994, %v912, 0
    %v1029 = vsel %vm994, %v927, 0
    %v1032 = vsel %vm994, %v942, 0
    %v1035 = vsel %vm994, %v957, 0
    %v1038 = vsel %vm994, %v972, 0
    %v1041 = vsel %vm994, %v987, 0
    %1043 = vmatpush.msra.mxu0 0.0
    %1044 = vmatpush.msra.mxu0 0.0
    %1045 = vmatpush.msra.mxu0 0.0
    %1046 = vmatpush.msra.mxu0 0.0
    %1047 = vmatpush.msra.mxu0 0.0
    %1048 = vmatpush.msra.mxu0 0.0
    %1049 = vmatpush.msra.mxu0 0.0
    %1050 = vmatpush.msra.mxu0 0.0
    %1051 = vmatpush.msra.mxu0 0.0
    %1052 = vmatpush.msra.mxu0 0.0
    %1053 = vmatpush.msra.mxu0 0.0
    %1054 = vmatpush.msra.mxu0 0.0
    %1055 = vmatpush.msra.mxu0 0.0
    %1056 = vmatpush.msra.mxu0 0.0
    %1057 = vmatpush.msra.mxu0 %v989
    %1058 = vmatpush.msra.mxu0 %v988
    %1059 = vmatmul.f32.gmra.mxu0 %v996
    %v1060 = vpop.f32.mrf.mxu0
    %v1061 = vadd.f32 %v992, %v1060
    %1062 = vmatmul.f32.gmra.mxu0 %v999
    %v1063 = vpop.f32.mrf.mxu0
    %v1064 = vadd.f32 %v992, %v1063
    %1065 = vmatmul.f32.gmra.mxu0 %v1002
    %v1066 = vpop.f32.mrf.mxu0
    %v1067 = vadd.f32 %v992, %v1066
    %1068 = vmatmul.f32.gmra.mxu0 %v1005
    %v1069 = vpop.f32.mrf.mxu0
    %v1070 = vadd.f32 %v992, %v1069
    %1071 = vmatmul.f32.gmra.mxu0 %v1008
    %v1072 = vpop.f32.mrf.mxu0
    %v1073 = vadd.f32 %v992, %v1072
    %1074 = vmatmul.f32.gmra.mxu0 %v1011
    %v1075 = vpop.f32.mrf.mxu0
    %v1076 = vadd.f32 %v992, %v1075
    %1077 = vmatmul.f32.gmra.mxu0 %v1014
    %v1078 = vpop.f32.mrf.mxu0
    %v1079 = vadd.f32 %v992, %v1078
    %1080 = vmatmul.f32.gmra.mxu0 %v1017
    %v1081 = vpop.f32.mrf.mxu0
    %v1082 = vadd.f32 %v992, %v1081
    %1083 = vmatmul.f32.gmra.mxu0 %v1020
    %v1084 = vpop.f32.mrf.mxu0
    %v1085 = vadd.f32 %v992, %v1084
    %1086 = vmatmul.f32.gmra.mxu0 %v1023
    %v1087 = vpop.f32.mrf.mxu0
    %v1088 = vadd.f32 %v992, %v1087
    %1089 = vmatmul.f32.gmra.mxu0 %v1026
    %v1090 = vpop.f32.mrf.mxu0
    %v1091 = vadd.f32 %v992, %v1090
    %1092 = vmatmul.f32.gmra.mxu0 %v1029
    %v1093 = vpop.f32.mrf.mxu0
    %v1094 = vadd.f32 %v992, %v1093
    %1095 = vmatmul.f32.gmra.mxu0 %v1032
    %v1096 = vpop.f32.mrf.mxu0
    %v1097 = vadd.f32 %v992, %v1096
    %1098 = vmatmul.f32.gmra.mxu0 %v1035
    %v1099 = vpop.f32.mrf.mxu0
    %v1100 = vadd.f32 %v992, %v1099
    %1101 = vmatmul.f32.gmra.mxu0 %v1038
    %v1102 = vpop.f32.mrf.mxu0
    %v1103 = vadd.f32 %v992, %v1102
    %1104 = vmatmul.f32.gmra.mxu0 %v1041
    %v1105 = vpop.f32.mrf.mxu0
    %v1106 = vadd.f32 %v992, %v1105
    %1107 = vdwg.mxu0
    %v1108 = vxor.u32 %v1061, 2147483648
    %v1109 = vxor.u32 %v1064, 2147483648
    %v1110 = vxor.u32 %v1067, 2147483648
    %v1111 = vxor.u32 %v1070, 2147483648
    %v1112 = vxor.u32 %v1073, 2147483648
    %v1113 = vxor.u32 %v1076, 2147483648
    %v1114 = vxor.u32 %v1079, 2147483648
    %v1115 = vxor.u32 %v1082, 2147483648
    %v1116 = vxor.u32 %v1085, 2147483648
    %v1117 = vxor.u32 %v1088, 2147483648
    %v1118 = vxor.u32 %v1091, 2147483648
    %v1119 = vxor.u32 %v1094, 2147483648
    %v1120 = vxor.u32 %v1097, 2147483648
    %v1121 = vxor.u32 %v1100, 2147483648
    %v1122 = vxor.u32 %v1103, 2147483648
    %v1123 = vxor.u32 %v1106, 2147483648
    %v1124 = vmul.f32 %v1108, 1.442695
    %v1125 = vpow.pop %v1124
    %v1126 = vmul.f32 %v1109, 1.442695
    %v1127 = vpow.pop %v1126
    %v1128 = vmul.f32 %v1110, 1.442695
    %v1129 = vpow.pop %v1128
    %v1130 = vmul.f32 %v1111, 1.442695
    %v1131 = vpow.pop %v1130
    %v1132 = vmul.f32 %v1112, 1.442695
    %v1133 = vpow.pop %v1132
    %v1134 = vmul.f32 %v1113, 1.442695
    %v1135 = vpow.pop %v1134
    %v1136 = vmul.f32 %v1114, 1.442695
    %v1137 = vpow.pop %v1136
    %v1138 = vmul.f32 %v1115, 1.442695
    %v1139 = vpow.pop %v1138
    %v1140 = vmul.f32 %v1116, 1.442695
    %v1141 = vpow.pop %v1140
    %v1142 = vmul.f32 %v1117, 1.442695
    %v1143 = vpow.pop %v1142
    %v1144 = vmul.f32 %v1118, 1.442695
    %v1145 = vpow.pop %v1144
    %v1146 = vmul.f32 %v1119, 1.442695
    %v1147 = vpow.pop %v1146
    %v1148 = vmul.f32 %v1120, 1.442695
    %v1149 = vpow.pop %v1148
    %v1150 = vmul.f32 %v1121, 1.442695
    %v1151 = vpow.pop %v1150
    %v1152 = vmul.f32 %v1122, 1.442695
    %v1153 = vpow.pop %v1152
    %v1154 = vmul.f32 %v1123, 1.442695
    %v1155 = vpow.pop %v1154
    %v1156 = vadd.f32 %v1125, 1.0
    %v1157 = vadd.f32 %v1127, 1.0
    %v1158 = vadd.f32 %v1129, 1.0
    %v1159 = vadd.f32 %v1131, 1.0
    %v1160 = vadd.f32 %v1133, 1.0
    %v1161 = vadd.f32 %v1135, 1.0
    %v1162 = vadd.f32 %v1137, 1.0
    %v1163 = vadd.f32 %v1139, 1.0
    %v1164 = vadd.f32 %v1141, 1.0
    %v1165 = vadd.f32 %v1143, 1.0
    %v1166 = vadd.f32 %v1145, 1.0
    %v1167 = vadd.f32 %v1147, 1.0
    %v1168 = vadd.f32 %v1149, 1.0
    %v1169 = vadd.f32 %v1151, 1.0
    %v1170 = vadd.f32 %v1153, 1.0
    %v1171 = vadd.f32 %v1155, 1.0
    %v1172 = vrcp.pop %v1156
    %v1173 = vmul.f32 %v1156, %v1172
    %v1174 = vsub.f32 1.0, %v1173
    %v1175 = vmul.f32 %v1172, %v1174
    %v1176 = vadd.f32 %v1172, %v1175
    %vm1177 = vweird.f32 %v1156
    %vm1178 = vweird.f32 %v1172
    %vm1179 = vmor %vm1177, %vm1178
    %v1180 = vsel %vm1179, %v1172, %v1176
    %v1181 = vand.u32 2147483647, %v1156
    %vm1182 = vcmp.eq.f32.partialorder %v1181, 8.507059e+37
    %v1183 = vand.u32 %v1156, 2147483648
    %v1184 = vor.u32 1.1754944e-38, %v1183
    %v1185 = vsel %vm1182, %v1184, %v1180
    %v1186 = vmul.f32 1.0, %v1185
    %v1187 = vrcp.pop %v1157
    %v1188 = vmul.f32 %v1157, %v1187
    %v1189 = vsub.f32 1.0, %v1188
    %v1190 = vmul.f32 %v1187, %v1189
    %v1191 = vadd.f32 %v1187, %v1190
    %vm1192 = vweird.f32 %v1157
    %vm1193 = vweird.f32 %v1187
    %vm1194 = vmor %vm1192, %vm1193
    %v1195 = vsel %vm1194, %v1187, %v1191
    %v1196 = vand.u32 2147483647, %v1157
    %vm1197 = vcmp.eq.f32.partialorder %v1196, 8.507059e+37
    %v1198 = vand.u32 %v1157, 2147483648
    %v1199 = vor.u32 1.1754944e-38, %v1198
    %v1200 = vsel %vm1197, %v1199, %v1195
    %v1201 = vmul.f32 1.0, %v1200
    %v1202 = vrcp.pop %v1158
    %v1203 = vmul.f32 %v1158, %v1202
    %v1204 = vsub.f32 1.0, %v1203
    %v1205 = vmul.f32 %v1202, %v1204
    %v1206 = vadd.f32 %v1202, %v1205
    %vm1207 = vweird.f32 %v1158
    %vm1208 = vweird.f32 %v1202
    %vm1209 = vmor %vm1207, %vm1208
    %v1210 = vsel %vm1209, %v1202, %v1206
    %v1211 = vand.u32 2147483647, %v1158
    %vm1212 = vcmp.eq.f32.partialorder %v1211, 8.507059e+37
    %v1213 = vand.u32 %v1158, 2147483648
    %v1214 = vor.u32 1.1754944e-38, %v1213
    %v1215 = vsel %vm1212, %v1214, %v1210
    %v1216 = vmul.f32 1.0, %v1215
    %v1217 = vrcp.pop %v1159
    %v1218 = vmul.f32 %v1159, %v1217
    %v1219 = vsub.f32 1.0, %v1218
    %v1220 = vmul.f32 %v1217, %v1219
    %v1221 = vadd.f32 %v1217, %v1220
    %vm1222 = vweird.f32 %v1159
    %vm1223 = vweird.f32 %v1217
    %vm1224 = vmor %vm1222, %vm1223
    %v1225 = vsel %vm1224, %v1217, %v1221
    %v1226 = vand.u32 2147483647, %v1159
    %vm1227 = vcmp.eq.f32.partialorder %v1226, 8.507059e+37
    %v1228 = vand.u32 %v1159, 2147483648
    %v1229 = vor.u32 1.1754944e-38, %v1228
    %v1230 = vsel %vm1227, %v1229, %v1225
    %v1231 = vmul.f32 1.0, %v1230
    %v1232 = vrcp.pop %v1160
    %v1233 = vmul.f32 %v1160, %v1232
    %v1234 = vsub.f32 1.0, %v1233
    %v1235 = vmul.f32 %v1232, %v1234
    %v1236 = vadd.f32 %v1232, %v1235
    %vm1237 = vweird.f32 %v1160
    %vm1238 = vweird.f32 %v1232
    %vm1239 = vmor %vm1237, %vm1238
    %v1240 = vsel %vm1239, %v1232, %v1236
    %v1241 = vand.u32 2147483647, %v1160
    %vm1242 = vcmp.eq.f32.partialorder %v1241, 8.507059e+37
    %v1243 = vand.u32 %v1160, 2147483648
    %v1244 = vor.u32 1.1754944e-38, %v1243
    %v1245 = vsel %vm1242, %v1244, %v1240
    %v1246 = vmul.f32 1.0, %v1245
    %v1247 = vrcp.pop %v1161
    %v1248 = vmul.f32 %v1161, %v1247
    %v1249 = vsub.f32 1.0, %v1248
    %v1250 = vmul.f32 %v1247, %v1249
    %v1251 = vadd.f32 %v1247, %v1250
    %vm1252 = vweird.f32 %v1161
    %vm1253 = vweird.f32 %v1247
    %vm1254 = vmor %vm1252, %vm1253
    %v1255 = vsel %vm1254, %v1247, %v1251
    %v1256 = vand.u32 2147483647, %v1161
    %vm1257 = vcmp.eq.f32.partialorder %v1256, 8.507059e+37
    %v1258 = vand.u32 %v1161, 2147483648
    %v1259 = vor.u32 1.1754944e-38, %v1258
    %v1260 = vsel %vm1257, %v1259, %v1255
    %v1261 = vmul.f32 1.0, %v1260
    %v1262 = vrcp.pop %v1162
    %v1263 = vmul.f32 %v1162, %v1262
    %v1264 = vsub.f32 1.0, %v1263
    %v1265 = vmul.f32 %v1262, %v1264
    %v1266 = vadd.f32 %v1262, %v1265
    %vm1267 = vweird.f32 %v1162
    %vm1268 = vweird.f32 %v1262
    %vm1269 = vmor %vm1267, %vm1268
    %v1270 = vsel %vm1269, %v1262, %v1266
    %v1271 = vand.u32 2147483647, %v1162
    %vm1272 = vcmp.eq.f32.partialorder %v1271, 8.507059e+37
    %v1273 = vand.u32 %v1162, 2147483648
    %v1274 = vor.u32 1.1754944e-38, %v1273
    %v1275 = vsel %vm1272, %v1274, %v1270
    %v1276 = vmul.f32 1.0, %v1275
    %v1277 = vrcp.pop %v1163
    %v1278 = vmul.f32 %v1163, %v1277
    %v1279 = vsub.f32 1.0, %v1278
    %v1280 = vmul.f32 %v1277, %v1279
    %v1281 = vadd.f32 %v1277, %v1280
    %vm1282 = vweird.f32 %v1163
    %vm1283 = vweird.f32 %v1277
    %vm1284 = vmor %vm1282, %vm1283
    %v1285 = vsel %vm1284, %v1277, %v1281
    %v1286 = vand.u32 2147483647, %v1163
    %vm1287 = vcmp.eq.f32.partialorder %v1286, 8.507059e+37
    %v1288 = vand.u32 %v1163, 2147483648
    %v1289 = vor.u32 1.1754944e-38, %v1288
    %v1290 = vsel %vm1287, %v1289, %v1285
    %v1291 = vmul.f32 1.0, %v1290
    %v1292 = vrcp.pop %v1164
    %v1293 = vmul.f32 %v1164, %v1292
    %v1294 = vsub.f32 1.0, %v1293
    %v1295 = vmul.f32 %v1292, %v1294
    %v1296 = vadd.f32 %v1292, %v1295
    %vm1297 = vweird.f32 %v1164
    %vm1298 = vweird.f32 %v1292
    %vm1299 = vmor %vm1297, %vm1298
    %v1300 = vsel %vm1299, %v1292, %v1296
    %v1301 = vand.u32 2147483647, %v1164
    %vm1302 = vcmp.eq.f32.partialorder %v1301, 8.507059e+37
    %v1303 = vand.u32 %v1164, 2147483648
    %v1304 = vor.u32 1.1754944e-38, %v1303
    %v1305 = vsel %vm1302, %v1304, %v1300
    %v1306 = vmul.f32 1.0, %v1305
    %v1307 = vrcp.pop %v1165
    %v1308 = vmul.f32 %v1165, %v1307
    %v1309 = vsub.f32 1.0, %v1308
    %v1310 = vmul.f32 %v1307, %v1309
    %v1311 = vadd.f32 %v1307, %v1310
    %vm1312 = vweird.f32 %v1165
    %vm1313 = vweird.f32 %v1307
    %vm1314 = vmor %vm1312, %vm1313
    %v1315 = vsel %vm1314, %v1307, %v1311
    %v1316 = vand.u32 2147483647, %v1165
    %vm1317 = vcmp.eq.f32.partialorder %v1316, 8.507059e+37
    %v1318 = vand.u32 %v1165, 2147483648
    %v1319 = vor.u32 1.1754944e-38, %v1318
    %v1320 = vsel %vm1317, %v1319, %v1315
    %v1321 = vmul.f32 1.0, %v1320
    %v1322 = vrcp.pop %v1166
    %v1323 = vmul.f32 %v1166, %v1322
    %v1324 = vsub.f32 1.0, %v1323
    %v1325 = vmul.f32 %v1322, %v1324
    %v1326 = vadd.f32 %v1322, %v1325
    %vm1327 = vweird.f32 %v1166
    %vm1328 = vweird.f32 %v1322
    %vm1329 = vmor %vm1327, %vm1328
    %v1330 = vsel %vm1329, %v1322, %v1326
    %v1331 = vand.u32 2147483647, %v1166
    %vm1332 = vcmp.eq.f32.partialorder %v1331, 8.507059e+37
    %v1333 = vand.u32 %v1166, 2147483648
    %v1334 = vor.u32 1.1754944e-38, %v1333
    %v1335 = vsel %vm1332, %v1334, %v1330
    %v1336 = vmul.f32 1.0, %v1335
    %v1337 = vrcp.pop %v1167
    %v1338 = vmul.f32 %v1167, %v1337
    %v1339 = vsub.f32 1.0, %v1338
    %v1340 = vmul.f32 %v1337, %v1339
    %v1341 = vadd.f32 %v1337, %v1340
    %vm1342 = vweird.f32 %v1167
    %vm1343 = vweird.f32 %v1337
    %vm1344 = vmor %vm1342, %vm1343
    %v1345 = vsel %vm1344, %v1337, %v1341
    %v1346 = vand.u32 2147483647, %v1167
    %vm1347 = vcmp.eq.f32.partialorder %v1346, 8.507059e+37
    %v1348 = vand.u32 %v1167, 2147483648
    %v1349 = vor.u32 1.1754944e-38, %v1348
    %v1350 = vsel %vm1347, %v1349, %v1345
    %v1351 = vmul.f32 1.0, %v1350
    %v1352 = vrcp.pop %v1168
    %v1353 = vmul.f32 %v1168, %v1352
    %v1354 = vsub.f32 1.0, %v1353
    %v1355 = vmul.f32 %v1352, %v1354
    %v1356 = vadd.f32 %v1352, %v1355
    %vm1357 = vweird.f32 %v1168
    %vm1358 = vweird.f32 %v1352
    %vm1359 = vmor %vm1357, %vm1358
    %v1360 = vsel %vm1359, %v1352, %v1356
    %v1361 = vand.u32 2147483647, %v1168
    %vm1362 = vcmp.eq.f32.partialorder %v1361, 8.507059e+37
    %v1363 = vand.u32 %v1168, 2147483648
    %v1364 = vor.u32 1.1754944e-38, %v1363
    %v1365 = vsel %vm1362, %v1364, %v1360
    %v1366 = vmul.f32 1.0, %v1365
    %v1367 = vrcp.pop %v1169
    %v1368 = vmul.f32 %v1169, %v1367
    %v1369 = vsub.f32 1.0, %v1368
    %v1370 = vmul.f32 %v1367, %v1369
    %v1371 = vadd.f32 %v1367, %v1370
    %vm1372 = vweird.f32 %v1169
    %vm1373 = vweird.f32 %v1367
    %vm1374 = vmor %vm1372, %vm1373
    %v1375 = vsel %vm1374, %v1367, %v1371
    %v1376 = vand.u32 2147483647, %v1169
    %vm1377 = vcmp.eq.f32.partialorder %v1376, 8.507059e+37
    %v1378 = vand.u32 %v1169, 2147483648
    %v1379 = vor.u32 1.1754944e-38, %v1378
    %v1380 = vsel %vm1377, %v1379, %v1375
    %v1381 = vmul.f32 1.0, %v1380
    %v1382 = vrcp.pop %v1170
    %v1383 = vmul.f32 %v1170, %v1382
    %v1384 = vsub.f32 1.0, %v1383
    %v1385 = vmul.f32 %v1382, %v1384
    %v1386 = vadd.f32 %v1382, %v1385
    %vm1387 = vweird.f32 %v1170
    %vm1388 = vweird.f32 %v1382
    %vm1389 = vmor %vm1387, %vm1388
    %v1390 = vsel %vm1389, %v1382, %v1386
    %v1391 = vand.u32 2147483647, %v1170
    %vm1392 = vcmp.eq.f32.partialorder %v1391, 8.507059e+37
    %v1393 = vand.u32 %v1170, 2147483648
    %v1394 = vor.u32 1.1754944e-38, %v1393
    %v1395 = vsel %vm1392, %v1394, %v1390
    %v1396 = vmul.f32 1.0, %v1395
    %v1397 = vrcp.pop %v1171
    %v1398 = vmul.f32 %v1171, %v1397
    %v1399 = vsub.f32 1.0, %v1398
    %v1400 = vmul.f32 %v1397, %v1399
    %v1401 = vadd.f32 %v1397, %v1400
    %vm1402 = vweird.f32 %v1171
    %vm1403 = vweird.f32 %v1397
    %vm1404 = vmor %vm1402, %vm1403
    %v1405 = vsel %vm1404, %v1397, %v1401
    %v1406 = vand.u32 2147483647, %v1171
    %vm1407 = vcmp.eq.f32.partialorder %v1406, 8.507059e+37
    %v1408 = vand.u32 %v1171, 2147483648
    %v1409 = vor.u32 1.1754944e-38, %v1408
    %v1410 = vsel %vm1407, %v1409, %v1405
    %v1411 = vmul.f32 1.0, %v1410
    %1412 = vst [vmem:[#allocation2] sm:$0xff] %v1186
    %1413 = vst [vmem:[#allocation2 + $0x8] sm:$0xff] %v1201
    %1414 = vst [vmem:[#allocation2 + $0x10] sm:$0xff] %v1216
    %1415 = vst [vmem:[#allocation2 + $0x18] sm:$0xff] %v1231
    %1416 = vst [vmem:[#allocation2 + $0x20] sm:$0xff] %v1246
    %1417 = vst [vmem:[#allocation2 + $0x28] sm:$0xff] %v1261
    %1418 = vst [vmem:[#allocation2 + $0x30] sm:$0xff] %v1276
    %1419 = vst [vmem:[#allocation2 + $0x38] sm:$0xff] %v1291
    %1420 = vst [vmem:[#allocation2 + $0x40] sm:$0xff] %v1306
    %1421 = vst [vmem:[#allocation2 + $0x48] sm:$0xff] %v1321
    %1422 = vst [vmem:[#allocation2 + $0x50] sm:$0xff] %v1336
    %1423 = vst [vmem:[#allocation2 + $0x58] sm:$0xff] %v1351
    %1424 = vst [vmem:[#allocation2 + $0x60] sm:$0xff] %v1366
    %1425 = vst [vmem:[#allocation2 + $0x68] sm:$0xff] %v1381
    %1426 = vst [vmem:[#allocation2 + $0x70] sm:$0xff] %v1396
    %1427 = vst [vmem:[#allocation2 + $0x78] sm:$0xff] %v1411
    // Predicated region
    $region30: #{tpu_custom_call.1} parent=1 // pred_check
      _
    $region31: #{tpu_custom_call.1} parent=1 // pred_check_branch
      %1429 = sbr.rel (0) target = $region33
    $region32: #{tpu_custom_call.1} parent=1 // pred_region
      %1431 = vsyncadd [#allocation3], 0
      %s1432 = sshll.u32 [#allocation2], 4
      %s1433 = int_to_ptr.vmem [resolvable:$true] %s1432
      %s1434 = sshll.u32 %s7, 4
      %s1435 = int_to_ptr.hbm [resolvable:$true] %s1434
      %1440 = dma.vmem_to_hbm [thread:$0]  %s1433, 2048, %s1435, [#allocation3], 128, 128, 8
    $region33: #{tpu_custom_call.1} parent=1 // pred_fallthru
      _
    // Predicated region
    $region34: #{tpu_custom_call.1} parent=1 // pred_check
      _
    $region35: #{tpu_custom_call.1} parent=1 // pred_check_branch
      %1442 = sbr.rel (0) target = $region37
    $region36: #{tpu_custom_call.1} parent=1 // pred_region
      %1444 = dma.done [#allocation3], 2048
    $region37: #{tpu_custom_call.1} parent=1 // pred_fallthru
      _
    %1445 = vsyncpa [#allocation3], 1

</llo_original>
